<compile_context>
chip_gen: v5e
topology: v5e:2x2
jax: 0.10.0
libtpu: 0.0.40
codegen_flags: <defaults>
</compile_context>

<pallas_src>
import functools

import jax
import jax.numpy as jnp
from jax.experimental import pallas as pl
from jax.experimental.pallas import tpu as pltpu


def _spatial_attention_kernel(params_ref, x_ref, out_ref, mhat_ref, *,
                              seq_len, tile_l, inv_len):
    """One (batch b, L-tile l) grid step.

    params_ref : SMEM f32[3]   -- [w_max', w_avg', bias'] (conv1x1 + BN folded)
    x_ref      : VMEM (TL, C)  -- input tile, channels-last (lanes = C)
    out_ref    : VMEM (1, C)   -- resident accumulator over L -> mean at the end
    mhat_ref   : VMEM (TL, C)  -- attended-features tile (streamed out)
    """
    l = pl.program_id(1)
    n_l = pl.num_programs(1)

    @pl.when(l == 0)
    def _init():
        out_ref[...] = jnp.zeros_like(out_ref)

    x = x_ref[...].astype(jnp.float32)                       # (TL, C)

    w_max = params_ref[0]
    w_avg = params_ref[1]
    bias = params_ref[2]

    # Channel statistics: C is the lane (last) axis -> cheap cross-lane reductions.
    max_f = jnp.max(x, axis=-1, keepdims=True)               # (TL, 1)
    avg_f = jnp.mean(x, axis=-1, keepdims=True)              # (TL, 1)

    # Conv1d(2->1, k=1) + eval BatchNorm1d(1) folded; then ReLU, sigmoid.
    fmap = w_max * max_f + w_avg * avg_f + bias               # (TL, 1)
    fmap = jnp.maximum(fmap, 0.0)
    m = 1.0 / (1.0 + jnp.exp(-fmap))                          # exp lands on the EUP

    m_hat = x * m                                             # (TL, C)
    mhat_ref[...] = m_hat.astype(mhat_ref.dtype)

    # Accumulate sum over L.  The last tile may be partial (L % TL != 0):
    # mask rows past seq_len (their m_hat stores are dropped by Pallas anyway).
    row = l * tile_l + jax.lax.broadcasted_iota(jnp.int32, (tile_l, 1), 0)
    contrib = jnp.where(row < seq_len, m_hat, 0.0)            # (TL, C)
    out_ref[...] += jnp.sum(contrib, axis=0, keepdims=True)   # (1, C)

    @pl.when(l == n_l - 1)
    def _finalize():
        out_ref[...] = out_ref[...] * inv_len


def _choose_l_tile(seq_len, channels, itemsize,
                   vmem_budget_bytes=24 * 1024 * 1024, max_tile=2048):
    """Largest L tile whose double-buffered x + m_hat tiles fit the VMEM budget.

    The pipeline holds ~4 tiles of (TL, C): x and m_hat, each double-buffered.
    Budget is kept <= ~24 MiB so it is safe even on v7x (64 MiB physical VMEM).
    """
    bytes_per_row = 4 * channels * itemsize
    tl = max(8, vmem_budget_bytes // max(bytes_per_row, 1))
    tl = min(tl, max_tile)
    if tl >= seq_len:
        return seq_len
    return max(8, (tl // 8) * 8)          # keep sublane dim a multiple of 8


def spatial_attention(x_blc, conv_w, conv_b, bn_gamma, bn_beta, bn_mean, bn_var,
                      bn_eps=1e-5, *, l_tile=None, mhat_channels_first=False):
    """x_blc: (B, L, C).

    Returns (output (B, C), m_hat (B, L, C)).  m_hat equals the PyTorch module's
    m_hat transposed to channels-last; pass mhat_channels_first=True for (B, C, L).
    """
    B, L, C = x_blc.shape
    x_dtype = x_blc.dtype

    # Fold Conv1d(2, 1, k=1) + eval-mode BatchNorm1d(1) into three scalars:
    #   sigmoid(relu(w_max'*max + w_avg'*avg + bias'))
    scale = bn_gamma[0].astype(jnp.float32) * jax.lax.rsqrt(
        bn_var[0].astype(jnp.float32) + jnp.float32(bn_eps))
    w_max_f = conv_w[0, 0, 0].astype(jnp.float32) * scale
    w_avg_f = conv_w[0, 1, 0].astype(jnp.float32) * scale
    bias_f = (conv_b[0].astype(jnp.float32) - bn_mean[0].astype(jnp.float32)) * scale \
        + bn_beta[0].astype(jnp.float32)
    params = jnp.stack([w_max_f, w_avg_f, bias_f]).astype(jnp.float32)   # (3,)

    if l_tile is None:
        l_tile = _choose_l_tile(L, C, x_blc.dtype.itemsize)
    l_tile = int(l_tile)
    if l_tile >= L:
        l_tile = L                               # full dim -> always legal block
    else:
        l_tile = max(8, (l_tile // 8) * 8)       # sublane-aligned partial tiles
    n_l = pl.cdiv(L, l_tile)

    kernel = functools.partial(_spatial_attention_kernel,
                               seq_len=L, tile_l=l_tile, inv_len=1.0 / L)

    out_sum, m_hat = pl.pallas_call(
        kernel,
        grid=(B, n_l),
        in_specs=[
            # 3 folded scalars, resident in SMEM.
            pl.BlockSpec(memory_space=pltpu.MemorySpace.SMEM),
            # x tile: (TL, C), full channel extent so the channel max/mean stays in-tile.
            pl.BlockSpec((None, l_tile, C), lambda b, l: (b, l, 0)),
        ],
        out_specs=(
            # Mean-over-L accumulator: same block for every l (revisited), lane-dense C.
            pl.BlockSpec((None, 1, C), lambda b, l: (b, 0, 0)),
            # m_hat tile, streamed out in the same (B, L, C) layout as the input.
            pl.BlockSpec((None, l_tile, C), lambda b, l: (b, l, 0)),
        ),
        out_shape=(
            jax.ShapeDtypeStruct((B, 1, C), jnp.float32),
            jax.ShapeDtypeStruct((B, L, C), x_dtype),
        ),
        compiler_params=pltpu.CompilerParams(
            # B is independent (shards across v7x's 2 TensorCores); L carries the
            # mean accumulator so it must stay "arbitrary".
            dimension_semantics=("parallel", "arbitrary"),
            vmem_limit_bytes=48 * 1024 * 1024,
        ),
    )(params, x_blc)

    output = out_sum.reshape(B, C).astype(x_dtype)
    if mhat_channels_first:
        m_hat = jnp.transpose(m_hat, (0, 2, 1))
    return output, m_hat


def _reference(x_blc, conv_w, conv_b, bn_gamma, bn_beta, bn_mean, bn_var, eps=1e-5):
    """Un-fused reference mirroring SpatialAttention.forward, in (B, L, C) layout."""
    max_f = jnp.max(x_blc, axis=-1, keepdims=True)        # max over channels
    avg_f = jnp.mean(x_blc, axis=-1, keepdims=True)       # mean over channels
    fmap = conv_w[0, 0, 0] * max_f + conv_w[0, 1, 0] * avg_f + conv_b[0]
    fmap = (fmap - bn_mean[0]) / jnp.sqrt(bn_var[0] + eps) * bn_gamma[0] + bn_beta[0]
    m = jax.nn.sigmoid(jnp.maximum(fmap, 0.0))
    m_hat_blc = x_blc * m                                  # == PyTorch m_hat.transpose(1, 2)
    output = jnp.mean(m_hat_blc, axis=1)                   # mean over L
    return output, m_hat_blc


if __name__ == "__main__":
    key = jax.random.PRNGKey(0)
    k_x, k_w, k_b, k_x2 = jax.random.split(key, 4)

    # Shared synthetic parameters (shapes from nn.Conv1d(2,1,1) + nn.BatchNorm1d(1)).
    conv_w = jax.random.normal(k_w, (1, 2, 1), dtype=jnp.float32) * 0.5
    conv_b = jax.random.normal(k_b, (1,), dtype=jnp.float32) * 0.1
    bn_gamma = jnp.full((1,), 1.1, dtype=jnp.float32)
    bn_beta = jnp.full((1,), 0.05, dtype=jnp.float32)
    bn_mean = jnp.full((1,), 0.02, dtype=jnp.float32)
    bn_var = jnp.full((1,), 0.9, dtype=jnp.float32)

    # --- Case 1: small shape consistent with the module's (B, L, C) input ---
    B, L, C = 2, 16, 4
    x = jax.random.normal(k_x, (B, L, C), dtype=jnp.float32)

    out, m_hat = spatial_attention(x, conv_w, conv_b, bn_gamma, bn_beta,
                                   bn_mean, bn_var)
    jax.block_until_ready((out, m_hat))

    ref_out, ref_mhat = _reference(x, conv_w, conv_b, bn_gamma, bn_beta,
                                   bn_mean, bn_var)
    assert out.shape == (B, C) and m_hat.shape == (B, L, C)
    assert jnp.allclose(out, ref_out, atol=1e-5, rtol=1e-5)
    assert jnp.allclose(m_hat, ref_mhat, atol=1e-5, rtol=1e-5)

    # --- Case 2: exercises the (B, L-tile) grid, accumulator and partial last tile ---
    B2, L2, C2 = 2, 200, 128            # l_tile=64 -> 4 L-tiles, last one partial
    x2 = jax.random.normal(k_x2, (B2, L2, C2), dtype=jnp.float32)
    out2, m_hat2 = spatial_attention(x2, conv_w, conv_b, bn_gamma, bn_beta,
                                     bn_mean, bn_var, l_tile=64)
    jax.block_until_ready((out2, m_hat2))

    ref_out2, ref_mhat2 = _reference(x2, conv_w, conv_b, bn_gamma, bn_beta,
                                     bn_mean, bn_var)
    assert out2.shape == (B2, C2) and m_hat2.shape == (B2, L2, C2)
    assert jnp.allclose(out2, ref_out2, atol=1e-5, rtol=1e-5)
    assert jnp.allclose(m_hat2, ref_mhat2, atol=1e-5, rtol=1e-5)

    print("KERNEL_OK")
</pallas_src>

<mosaic_0001>
module attributes {stable_mosaic.version = 11 : i64} {
  func.func @_spatial_attention_kernel(%arg0: i32, %arg1: i32, %arg2: memref<3xf32, #tpu.memory_space<smem>>, %arg3: memref<1x16x4xf32, #tpu.memory_space<vmem>>, %arg4: memref<1x1x4xf32, #tpu.memory_space<vmem>>, %arg5: memref<1x16x4xf32, #tpu.memory_space<vmem>>) attributes {dimension_semantics = [#tpu.dimension_semantics<parallel>, #tpu.dimension_semantics<arbitrary>], iteration_bounds = array<i64: 2, 1>, scalar_prefetch = 0 : i64, scratch_operands = 0 : i64, tpu.core_type = #tpu.core_type<tc>, window_params = [{transform_indices = @transform_0, window_bounds = array<i64: 3>}, {transform_indices = @transform_1, window_bounds = array<i64: 1, 16, 4>}, {transform_indices = @transform_2, window_bounds = array<i64: 1, 1, 4>}, {transform_indices = @transform_3, window_bounds = array<i64: 1, 16, 4>}]} {
    %c0_i32 = arith.constant 0 : i32
    %0 = arith.cmpi eq, %arg1, %c0_i32 : i32
    %1 = arith.extui %0 : i1 to i32
    %c0_i32_0 = arith.constant 0 : i32
    %2 = arith.cmpi ne, %1, %c0_i32_0 : i32
    scf.if %2 {
      %cst_24 = arith.constant 0.000000e+00 : f32
      %56 = vector.broadcast %cst_24 : f32 to vector<1x4xf32>
      %c0_25 = arith.constant 0 : index
      %c0_26 = arith.constant 0 : index
      %c0_27 = arith.constant 0 : index
      %57 = vector.load %arg4[%c0_25, %c0_26, %c0_27] : memref<1x1x4xf32, #tpu.memory_space<vmem>>, vector<1x1x4xf32>
      %58 = vector.shape_cast %57 : vector<1x1x4xf32> to vector<1x4xf32>
      %59 = vector.shape_cast %56 : vector<1x4xf32> to vector<1x1x4xf32>
      tpu.vector_store %arg4[%c0_25, %c0_26, %c0_27], %59 {strides = array<i32>} : memref<1x1x4xf32, #tpu.memory_space<vmem>>, vector<1x1x4xf32>,
    } else {
    }
    %c0 = arith.constant 0 : index
    %c0_1 = arith.constant 0 : index
    %c0_2 = arith.constant 0 : index
    %3 = vector.load %arg3[%c0, %c0_1, %c0_2] : memref<1x16x4xf32, #tpu.memory_space<vmem>>, vector<1x16x4xf32>
    %4 = vector.shape_cast %3 : vector<1x16x4xf32> to vector<16x4xf32>
    %c0_3 = arith.constant 0 : index
    %5 = memref.load %arg2[%c0_3] : memref<3xf32, #tpu.memory_space<smem>>
    %c1 = arith.constant 1 : index
    %6 = memref.load %arg2[%c1] : memref<3xf32, #tpu.memory_space<smem>>
    %c2 = arith.constant 2 : index
    %7 = memref.load %arg2[%c2] : memref<3xf32, #tpu.memory_space<smem>>
    %cst = arith.constant dense<0xFF800000> : vector<16xf32>
    %8 = vector.multi_reduction <maximumf>, %4, %cst [1] : vector<16x4xf32> to vector<16xf32>
    %9 = vector.shape_cast %8 : vector<16xf32> to vector<16x1xf32>
    %cst_4 = arith.constant dense<0.000000e+00> : vector<16xf32>
    %10 = vector.multi_reduction <add>, %4, %cst_4 [1] : vector<16x4xf32> to vector<16xf32>
    %11 = vector.shape_cast %10 : vector<16xf32> to vector<16x1xf32>
    %cst_5 = arith.constant 4.000000e+00 : f32
    %12 = vector.broadcast %cst_5 : f32 to vector<16x1xf32>
    %13 = arith.divf %11, %12 : vector<16x1xf32>
    %14 = vector.broadcast %5 : f32 to vector<16x1xf32>
    %15 = arith.mulf %14, %9 : vector<16x1xf32>
    %16 = vector.broadcast %6 : f32 to vector<16x1xf32>
    %17 = arith.mulf %16, %13 : vector<16x1xf32>
    %18 = arith.addf %15, %17 : vector<16x1xf32>
    %19 = vector.broadcast %7 : f32 to vector<16x1xf32>
    %20 = arith.addf %18, %19 : vector<16x1xf32>
    %cst_6 = arith.constant 0.000000e+00 : f32
    %21 = vector.broadcast %cst_6 : f32 to vector<16x1xf32>
    %22 = arith.maximumf %20, %21 : vector<16x1xf32>
    %cst_7 = arith.constant 0.000000e+00 : f32
    %23 = vector.broadcast %cst_7 : f32 to vector<16x1xf32>
    %24 = arith.subf %23, %22 : vector<16x1xf32>
    %25 = math.exp %24 : vector<16x1xf32>
    %cst_8 = arith.constant 1.000000e+00 : f32
    %26 = vector.broadcast %cst_8 : f32 to vector<16x1xf32>
    %27 = arith.addf %26, %25 : vector<16x1xf32>
    %cst_9 = arith.constant 1.000000e+00 : f32
    %28 = vector.broadcast %cst_9 : f32 to vector<16x1xf32>
    %29 = arith.divf %28, %27 : vector<16x1xf32>
    %30 = vector.broadcast %29 : vector<16x1xf32> to vector<16x4xf32>
    %31 = arith.mulf %4, %30 : vector<16x4xf32>
    %c0_10 = arith.constant 0 : index
    %c0_11 = arith.constant 0 : index
    %c0_12 = arith.constant 0 : index
    %32 = vector.load %arg5[%c0_10, %c0_11, %c0_12] : memref<1x16x4xf32, #tpu.memory_space<vmem>>, vector<1x16x4xf32>
    %33 = vector.shape_cast %32 : vector<1x16x4xf32> to vector<16x4xf32>
    %34 = vector.shape_cast %31 : vector<16x4xf32> to vector<1x16x4xf32>
    tpu.vector_store %arg5[%c0_10, %c0_11, %c0_12], %34 {strides = array<i32>} : memref<1x16x4xf32, #tpu.memory_space<vmem>>, vector<1x16x4xf32>,
    %c16_i32 = arith.constant 16 : i32
    %35 = arith.muli %arg1, %c16_i32 : i32
    %36 = tpu.iota {dimensions = array<i32: 0>} : vector<16x1xi32>
    %37 = vector.broadcast %35 : i32 to vector<16x1xi32>
    %38 = arith.addi %37, %36 : vector<16x1xi32>
    %c16_i32_13 = arith.constant 16 : i32
    %39 = vector.broadcast %c16_i32_13 : i32 to vector<16x1xi32>
    %40 = arith.cmpi slt, %38, %39 : vector<16x1xi32>
    %cst_14 = arith.constant 0.000000e+00 : f32
    %41 = vector.shape_cast %40 : vector<16x1xi1> to vector<16x1xi1>
    %42 = vector.broadcast %41 : vector<16x1xi1> to vector<16x4xi1>
    %43 = vector.broadcast %cst_14 : f32 to vector<16x4xf32>
    %44 = arith.select %42, %31, %43 : vector<16x4xi1>, vector<16x4xf32>
    %c0_15 = arith.constant 0 : index
    %c0_16 = arith.constant 0 : index
    %c0_17 = arith.constant 0 : index
    %45 = vector.load %arg4[%c0_15, %c0_16, %c0_17] : memref<1x1x4xf32, #tpu.memory_space<vmem>>, vector<1x1x4xf32>
    %46 = vector.shape_cast %45 : vector<1x1x4xf32> to vector<1x4xf32>
    %cst_18 = arith.constant dense<0.000000e+00> : vector<4xf32>
    %47 = vector.multi_reduction <add>, %44, %cst_18 [0] : vector<16x4xf32> to vector<4xf32>
    %48 = vector.shape_cast %47 : vector<4xf32> to vector<1x4xf32>
    %49 = arith.addf %46, %48 : vector<1x4xf32>
    %c0_19 = arith.constant 0 : index
    %c0_20 = arith.constant 0 : index
    %c0_21 = arith.constant 0 : index
    %50 = vector.load %arg4[%c0_19, %c0_20, %c0_21] : memref<1x1x4xf32, #tpu.memory_space<vmem>>, vector<1x1x4xf32>
    %51 = vector.shape_cast %50 : vector<1x1x4xf32> to vector<1x4xf32>
    %52 = vector.shape_cast %49 : vector<1x4xf32> to vector<1x1x4xf32>
    tpu.vector_store %arg4[%c0_19, %c0_20, %c0_21], %52 {strides = array<i32>} : memref<1x1x4xf32, #tpu.memory_space<vmem>>, vector<1x1x4xf32>,
    %c0_i32_22 = arith.constant 0 : i32
    %53 = arith.cmpi eq, %arg1, %c0_i32_22 : i32
    %54 = arith.extui %53 : i1 to i32
    %c0_i32_23 = arith.constant 0 : i32
    %55 = arith.cmpi ne, %54, %c0_i32_23 : i32
    scf.if %55 {
      %c0_24 = arith.constant 0 : index
      %c0_25 = arith.constant 0 : index
      %c0_26 = arith.constant 0 : index
      %56 = vector.load %arg4[%c0_24, %c0_25, %c0_26] : memref<1x1x4xf32, #tpu.memory_space<vmem>>, vector<1x1x4xf32>
      %57 = vector.shape_cast %56 : vector<1x1x4xf32> to vector<1x4xf32>
      %cst_27 = arith.constant 6.250000e-02 : f32
      %58 = vector.broadcast %cst_27 : f32 to vector<1x4xf32>
      %59 = arith.mulf %57, %58 : vector<1x4xf32>
      %c0_28 = arith.constant 0 : index
      %c0_29 = arith.constant 0 : index
      %c0_30 = arith.constant 0 : index
      %60 = vector.load %arg4[%c0_28, %c0_29, %c0_30] : memref<1x1x4xf32, #tpu.memory_space<vmem>>, vector<1x1x4xf32>
      %61 = vector.shape_cast %60 : vector<1x1x4xf32> to vector<1x4xf32>
      %62 = vector.shape_cast %59 : vector<1x4xf32> to vector<1x1x4xf32>
      tpu.vector_store %arg4[%c0_28, %c0_29, %c0_30], %62 {strides = array<i32>} : memref<1x1x4xf32, #tpu.memory_space<vmem>>, vector<1x1x4xf32>,
    } else {
    }
    return
  }
  func.func @transform_0(%arg0: i32, %arg1: i32) -> i32 {
    %c0_i32 = arith.constant 0 : i32
    %c0_i32_0 = arith.constant 0 : i32
    return %c0_i32 : i32
  }
  func.func @transform_1(%arg0: i32, %arg1: i32) -> (i32, i32, i32) {
    %c0_i32 = arith.constant 0 : i32
    %c0_i32_0 = arith.constant 0 : i32
    return %arg0, %arg1, %c0_i32 : i32, i32, i32
  }
  func.func @transform_2(%arg0: i32, %arg1: i32) -> (i32, i32, i32) {
    %c0_i32 = arith.constant 0 : i32
    %c0_i32_0 = arith.constant 0 : i32
    %c0_i32_1 = arith.constant 0 : i32
    return %arg0, %c0_i32, %c0_i32_0 : i32, i32, i32
  }
  func.func @transform_3(%arg0: i32, %arg1: i32) -> (i32, i32, i32) {
    %c0_i32 = arith.constant 0 : i32
    %c0_i32_0 = arith.constant 0 : i32
    return %arg0, %arg1, %c0_i32 : i32, i32, i32
  }
}

</mosaic_0001>

<llo_original>
// kernel: tpu_custom_call.1
$region0: #{tpu_custom_call.1}
  #allocation0 [shape = 'u32[]', space=smem, size = 0x4, offset = 0x4, fixed_abs, tag = 'smem constant byte address 0x4 - core index']
  #allocation1 [shape = 'u32[72,128]{1,0:T(1,128)}', space=vmem, size = 0x9000, scoped, tag = 'internal scratch']
  %s0 = inlined_call_operand.vmem [shape: f32[3], index: 0, kind: input, shape index: {}]
  %s1 = inlined_call_operand.vmem [shape: f32[2,16,4], index: 1, kind: input, shape index: {}]
  %s2 = inlined_call_operand.hbm [shape: f32[2,1,4], index: 2, kind: output, shape index: {0}]
  %s3 = inlined_call_operand.vmem [shape: f32[2,16,4], index: 3, kind: output, shape index: {1}]
  %4 = xla_tuple %s2, %s3
  %s5 = sld [smem:[#allocation0]]
  $region61: #{tpu_custom_call.1} parent=0
    _
  %s7 = ssub.s32 1, %s5
  %s8 = scalar_select 0, %s7, %s5
  $region1: #{tpu_custom_call.1} parent=0
    #allocation2 [shape = 'u8[512]{0}', space=smem, size = 0x200, scoped, tag = 'input window, operand 0, single buffered']
    #allocation3 [shape = 's32[2]{0}', space=sflag, size = 0x8, scoped, tag = 'scoped memory for tpu_custom_call.1']
    #allocation4 [shape = 's32[2]{0}', space=sflag, size = 0x8, scoped, tag = 'scoped memory for tpu_custom_call.1']
    #allocation5 [shape = 'u8[1024]{0}', space=vmem, size = 0x400, scoped, tag = 'output window, operand 0']
    %9 = vsyncpa [#allocation4], 0
    %10 = vsyncpa [#allocation3], 0
    %s11 = scalar_lea.sflag [#allocation3], 1
    %12 = vsyncpa %s11, 0
    loop: start=0, step=1, limit=4
    $region2: #{tpu_custom_call.1} parent=1 // loop_pre_header
      _
    $region3: #{tpu_custom_call.1} parent=1 // loop_header
      %s14 = sphi 0, %s18
      %p15 = scmp.ge.s32.totalorder %s14, 4
      %s21 = sphi 0, %s33
      %s22 = sphi 0, %s29
      %s23 = sphi 0, %s21
      %s24 = sphi 0, %s22
      %s25 = sphi 0, %s23
      %s26 = sphi 0, %s24
      %s34 = sphi 0, %s34
      %s36 = sphi 0, %s34
      %s37 = sphi 0, %s36
      %s51 = sphi 0, %s37
      %s59 = sphi 0, %s61
      %s62 = sphi 0, %s59
      %s63 = sphi 0, %s62
      %s79 = sphi 0, %s63
      %s85 = sphi 0, %s87
      %s88 = sphi 0, %s85
      %s89 = sphi 0, %s88
      %s105 = sphi 0, %s89
      %s113 = sphi 0, %s115
      %s116 = sphi 0, %s113
      %s117 = sphi 0, %s116
      %s133 = sphi 0, %s117
    $region4: #{tpu_custom_call.1} parent=1 // loop_header_branch
      %17 = sbr.rel (%p15) target = $region8
    $region5: #{tpu_custom_call.1} parent=1 // loop_body
      %s19 = ssub.s32 %s14, 1
      %s20 = ssub.s32 %s14, 2
      %s27 = sadd.s32 1, %s22
      %p28 = scmp.ge.s32.totalorder %s27, 1
      %s29 = scalar_select %p28, 0, %s27
      %s30 = sadd.s32 1, %s21
      %s31 = scalar_select %p28, %s30, %s21
      %p32 = scmp.ge.s32.totalorder %s31, 2
      %s33 = scalar_select %p32, 0, %s31
      %s35 = sadd.s32 %s34, 1
      %p38 = scmp.eq.s32.totalorder %s14, 1
      %p39 = scmp.ne.s32.totalorder %s34, %s36
      %p40 = scmp.eq.s32.totalorder %s14, 0
      %p41 = por %p39, %p40
      %p42 = scmp.ne.s32.totalorder %s34, %s36
      %p43 = scmp.eq.s32.totalorder %s19, 1
      %p44 = por %p42, %p43
      %p45 = scmp.ne.s32.totalorder %s36, %s37
      %p46 = scmp.eq.s32.totalorder %s19, 0
      %p47 = por %p45, %p46
      %p48 = scmp.ne.s32.totalorder %s36, %s37
      %p49 = scmp.eq.s32.totalorder %s20, 1
      %p50 = por %p48, %p49
      %p52 = scmp.ne.s32.totalorder %s37, %s51
      %p53 = scmp.eq.s32.totalorder %s20, 0
      %p54 = por %p52, %p53
      %s55 = ssub.s32 %s21, %s33
      %s56 = ssub.s32 %s22, %s29
      %s57 = sor.u32 %s55, %s56
      %p58 = scmp.eq.s32.totalorder %s57, 0
      %s60 = sadd.s32 %s59, 1
      %s61 = scalar_select %p58, %s59, %s60
      %p64 = pneg %p58
      %p65 = scmp.eq.s32.totalorder %s14, 1
      %p66 = por %p64, %p65
      %p67 = scmp.ne.s32.totalorder %s59, %s62
      %p68 = scmp.eq.s32.totalorder %s14, 0
      %p69 = por %p67, %p68
      %p70 = scmp.ne.s32.totalorder %s59, %s62
      %p71 = scmp.eq.s32.totalorder %s19, 1
      %p72 = por %p70, %p71
      %p73 = scmp.ne.s32.totalorder %s62, %s63
      %p74 = scmp.eq.s32.totalorder %s19, 0
      %p75 = por %p73, %p74
      %p76 = scmp.ne.s32.totalorder %s62, %s63
      %p77 = scmp.eq.s32.totalorder %s20, 1
      %p78 = por %p76, %p77
      %p80 = scmp.ne.s32.totalorder %s63, %s79
      %p81 = scmp.eq.s32.totalorder %s20, 0
      %p82 = por %p80, %p81
      %s83 = ssub.s32 %s21, %s33
      %p84 = scmp.eq.s32.totalorder %s83, 0
      %s86 = sadd.s32 %s85, 1
      %s87 = scalar_select %p84, %s85, %s86
      %p90 = pneg %p84
      %p91 = scmp.eq.s32.totalorder %s14, 1
      %p92 = por %p90, %p91
      %p93 = scmp.ne.s32.totalorder %s85, %s88
      %p94 = scmp.eq.s32.totalorder %s14, 0
      %p95 = por %p93, %p94
      %p96 = scmp.ne.s32.totalorder %s85, %s88
      %p97 = scmp.eq.s32.totalorder %s19, 1
      %p98 = por %p96, %p97
      %p99 = scmp.ne.s32.totalorder %s88, %s89
      %p100 = scmp.eq.s32.totalorder %s19, 0
      %p101 = por %p99, %p100
      %p102 = scmp.ne.s32.totalorder %s88, %s89
      %p103 = scmp.eq.s32.totalorder %s20, 1
      %p104 = por %p102, %p103
      %p106 = scmp.ne.s32.totalorder %s89, %s105
      %p107 = scmp.eq.s32.totalorder %s20, 0
      %p108 = por %p106, %p107
      %s109 = ssub.s32 %s21, %s33
      %s110 = ssub.s32 %s22, %s29
      %s111 = sor.u32 %s109, %s110
      %p112 = scmp.eq.s32.totalorder %s111, 0
      %s114 = sadd.s32 %s113, 1
      %s115 = scalar_select %p112, %s113, %s114
      %p118 = pneg %p112
      %p119 = scmp.eq.s32.totalorder %s14, 1
      %p120 = por %p118, %p119
      %p121 = scmp.ne.s32.totalorder %s113, %s116
      %p122 = scmp.eq.s32.totalorder %s14, 0
      %p123 = por %p121, %p122
      %p124 = scmp.ne.s32.totalorder %s113, %s116
      %p125 = scmp.eq.s32.totalorder %s19, 1
      %p126 = por %p124, %p125
      %p127 = scmp.ne.s32.totalorder %s116, %s117
      %p128 = scmp.eq.s32.totalorder %s19, 0
      %p129 = por %p127, %p128
      %p130 = scmp.ne.s32.totalorder %s116, %s117
      %p131 = scmp.eq.s32.totalorder %s20, 1
      %p132 = por %p130, %p131
      %p134 = scmp.ne.s32.totalorder %s117, %s133
      %p135 = scmp.eq.s32.totalorder %s20, 0
      %p136 = por %p134, %p135
      %p137 = scmp.le.s32.totalorder 1, %s14
      %p138 = scmp.lt.s32.totalorder %s14, 3
      %p139 = pnand %p137, %p138
      %p140 = pneg %p139
      // Predicated region
      $region9: #{tpu_custom_call.1} parent=5 // pred_check
        _
      $region10: #{tpu_custom_call.1} parent=5 // pred_check_branch
        %142 = sbr.rel (%p139) target = $region12
      $region11: #{tpu_custom_call.1} parent=5 // pred_region
        %s143 = ssub.s32 %s14, 1
        // Predicated region
        $region13: #{tpu_custom_call.1} parent=11 // pred_check
          %p144 = pneg %p47
        $region14: #{tpu_custom_call.1} parent=11 // pred_check_branch
          %146 = sbr.rel (%p144) target = $region16
        $region15: #{tpu_custom_call.1} parent=11 // pred_region
          %148 = vsyncadd [#allocation4], 0
          %s150 = sshll.u32 %s0, 4
          %s151 = int_to_ptr.vmem [resolvable:$true] %s150
          %153 = dma.vmem_to_smem %s151, 16, [#allocation2], [#allocation4]
        $region16: #{tpu_custom_call.1} parent=11 // pred_fallthru
          _
      $region12: #{tpu_custom_call.1} parent=5 // pred_fallthru
        _
      %p154 = scmp.lt.s32.totalorder %s14, 2
      // Predicated region
      $region17: #{tpu_custom_call.1} parent=5 // pred_check
        %p155 = pneg %p154
      $region18: #{tpu_custom_call.1} parent=5 // pred_check_branch
        %157 = sbr.rel (%p155) target = $region20
      $region19: #{tpu_custom_call.1} parent=5 // pred_region
        // Predicated region
        $region21: #{tpu_custom_call.1} parent=19 // pred_check
          %p158 = pneg %p69
        $region22: #{tpu_custom_call.1} parent=19 // pred_check_branch
          %160 = sbr.rel (%p158) target = $region24
        $region23: #{tpu_custom_call.1} parent=19 // pred_region
          %s161 = smul.u32 2, %s22
          %p162 = scmp.lt.s32.totalorder %s21, 1
          %s163 = scalar_select %p162, %s21, 1
          %p164 = scmp.lt.s32.totalorder %s161, 1
          %s165 = scalar_select %p164, %s161, 1
          %s166 = smul.addr %s163, 2
          %s167 = sadd.s32 %s165, %s166
          %s168 = smul.addr %s167, 8
          %s169 = scalar_lea.vmem %s1, %s168
          %s170 = smul.u32 2, %s22
        $region24: #{tpu_custom_call.1} parent=19 // pred_fallthru
          _
      $region20: #{tpu_custom_call.1} parent=5 // pred_fallthru
        _
      %p171 = scmp.le.s32.totalorder 1, %s14
      %p172 = scmp.lt.s32.totalorder %s14, 3
      %p173 = pnand %p171, %p172
      %p174 = pneg %p173
      // Predicated region
      $region25: #{tpu_custom_call.1} parent=5 // pred_check
        _
      $region26: #{tpu_custom_call.1} parent=5 // pred_check_branch
        %176 = sbr.rel (%p173) target = $region28
      $region27: #{tpu_custom_call.1} parent=5 // pred_region
        %s177 = ssub.s32 %s14, 1
        // Predicated region
        $region29: #{tpu_custom_call.1} parent=27 // pred_check
          %p178 = pneg %p47
        $region30: #{tpu_custom_call.1} parent=27 // pred_check_branch
          %180 = sbr.rel (%p178) target = $region32
        $region31: #{tpu_custom_call.1} parent=27 // pred_region
          %182 = dma.done [#allocation4], 16
        $region32: #{tpu_custom_call.1} parent=27 // pred_fallthru
          _
        %183 = sfence
        %p184 = pneg %p47
        %p185 = pneg %p44
        %s186 = smul.u32 2, %s24
        %p187 = scmp.lt.s32.totalorder %s23, 1
        %s188 = scalar_select %p187, %s23, 1
        %p189 = scmp.lt.s32.totalorder %s186, 1
        %s190 = scalar_select %p189, %s186, 1
        %s191 = smul.addr %s188, 2
        %s192 = sadd.s32 %s190, %s191
        %s193 = smul.addr %s192, 8
        %s194 = scalar_lea.vmem %s1, %s193
        %p195 = pneg %p75
        %p196 = pneg %p72
        %p197 = pneg %p101
        %p198 = pneg %p98
        %s199 = sand.u32 %s88, 1
        %s200 = scalar_lea.sflag [#allocation3], %s199
        %s201 = sand.u32 %s88, 1
        %s202 = scalar_lea.vmem [#allocation5], %s201
        %p203 = pneg %p129
        %p204 = pneg %p126
        %s205 = smul.u32 2, %s24
        %p206 = scmp.lt.s32.totalorder %s23, 1
        %s207 = scalar_select %p206, %s23, 1
        %p208 = scmp.lt.s32.totalorder %s205, 1
        %s209 = scalar_select %p208, %s205, 1
        %s210 = smul.addr %s207, 2
        %s211 = sadd.s32 %s209, %s210
        %s212 = smul.addr %s211, 8
        %s213 = scalar_lea.vmem %s3, %s212
        %s214 = smul.u32 2, %s24
        %p215 = scmp.lt.s32.totalorder %s23, 1
        %s216 = scalar_select %p215, %s23, 1
        %p217 = scmp.lt.s32.totalorder %s214, 1
        %s218 = scalar_select %p217, %s214, 1
        %s219 = smul.addr %s216, 2
        %s220 = sadd.s32 %s218, %s219
        %s221 = smul.addr %s220, 8
        %s222 = scalar_lea.vmem %s1, %s221
        %s223 = smul.u32 2, %s24
        %s224 = smul.u32 2, %s24
        %p225 = scmp.lt.s32.totalorder %s23, 1
        %s226 = scalar_select %p225, %s23, 1
        %p227 = scmp.lt.s32.totalorder %s224, 1
        %s228 = scalar_select %p227, %s224, 1
        %s229 = smul.addr %s226, 2
        %s230 = sadd.s32 %s228, %s229
        %s231 = smul.addr %s230, 8
        %s232 = scalar_lea.vmem %s3, %s231
        %s233 = smul.u32 2, %s24
        %p234 = scmp.eq.s32.totalorder %s24, 0
        // Predicated region
        $region33: #{tpu_custom_call.1} parent=27 // pred_check
          %p235 = pneg %p234
        $region34: #{tpu_custom_call.1} parent=27 // pred_check_branch
          %237 = sbr.rel (%p235) target = $region36
        $region35: #{tpu_custom_call.1} parent=27 // pred_region
          %vm238 = vcmask 24576
          %239 = vst.msk [vmem:[%s202] sm:$0x1] %vm238, 0.0
        $region36: #{tpu_custom_call.1} parent=27 // pred_fallthru
          _
        %v240 = vld [vmem:[%s222] sm:$0xff]
        %v241 = vld [vmem:[%s222 + $0x8] sm:$0xff]
        %s242 = sld [smem:[#allocation2]]
        %s243 = sld [smem:[#allocation2 + $0x1]]
        %s244 = sld [smem:[#allocation2 + $0x2]]
        %vm245 = vcmask 31744
        %v246 = vsel %vm245, %v240, -inf
        %247 = vmax.xlane.f32.xlu0 %v246
        %v248 = vpop.xlane.xlu0 %247
        %v249 = vsel %vm245, %v241, -inf
        %250 = vmax.xlane.f32.xlu0 %v249
        %v251 = vpop.xlane.xlu0 %250
        %v252 = vsel %vm245, %v240, 0.0
        %253 = vadd.xlane.f32.xlu0 %v252
        %v254 = vpop.xlane.xlu0 %253
        %v255 = vsel %vm245, %v241, 0.0
        %256 = vadd.xlane.f32.xlu0 %v255
        %v257 = vpop.xlane.xlu0 %256
        %v258 = vrcp.pop 4.0
        %v259 = vmul.f32 4.0, %v258
        %v260 = vsub.f32 1.0, %v259
        %v261 = vmul.f32 %v258, %v260
        %v262 = vadd.f32 %v258, %v261
        %vm263 = vweird.f32 %v258
        %v264 = vsel %vm263, %v258, %v262
        %v265 = vmul.f32 %v254, %v264
        %v266 = vmul.f32 %v257, %v264
        %v267 = vstv %s242
        %v268 = vmul.f32 %v267, %v248
        %v269 = vmul.f32 %v267, %v251
        %v270 = vstv %s243
        %v271 = vmul.f32 %v270, %v265
        %v272 = vmul.f32 %v270, %v266
        %v273 = vadd.f32 %v268, %v271
        %v274 = vadd.f32 %v269, %v272
        %v275 = vstv %s244
        %v276 = vadd.f32 %v273, %v275
        %v277 = vadd.f32 %v274, %v275
        %v278 = vmax.f32 %v276, 0.0
        %v279 = vmax.f32 %v277, 0.0
        %v280 = vsub.f32 0.0, %v278
        %v281 = vsub.f32 0.0, %v279
        %v282 = vmul.f32 %v280, 1.442695
        %v283 = vpow.pop %v282
        %v284 = vmul.f32 %v281, 1.442695
        %v285 = vpow.pop %v284
        %v286 = vadd.f32 %v283, 1.0
        %v287 = vadd.f32 %v285, 1.0
        %v288 = vrcp.pop %v286
        %v289 = vmul.f32 %v286, %v288
        %v290 = vsub.f32 1.0, %v289
        %v291 = vmul.f32 %v288, %v290
        %v292 = vadd.f32 %v288, %v291
        %vm293 = vweird.f32 %v286
        %vm294 = vweird.f32 %v288
        %vm295 = vmor %vm293, %vm294
        %v296 = vsel %vm295, %v288, %v292
        %v297 = vand.u32 2147483647, %v286
        %vm298 = vcmp.eq.f32.partialorder %v297, 8.507059e+37
        %v299 = vand.u32 %v286, 2147483648
        %v300 = vor.u32 1.1754944e-38, %v299
        %v301 = vsel %vm298, %v300, %v296
        %v302 = vmul.f32 1.0, %v301
        %v303 = vrcp.pop %v287
        %v304 = vmul.f32 %v287, %v303
        %v305 = vsub.f32 1.0, %v304
        %v306 = vmul.f32 %v303, %v305
        %v307 = vadd.f32 %v303, %v306
        %vm308 = vweird.f32 %v287
        %vm309 = vweird.f32 %v303
        %vm310 = vmor %vm308, %vm309
        %v311 = vsel %vm310, %v303, %v307
        %v312 = vand.u32 2147483647, %v287
        %vm313 = vcmp.eq.f32.partialorder %v312, 8.507059e+37
        %v314 = vand.u32 %v287, 2147483648
        %v315 = vor.u32 1.1754944e-38, %v314
        %v316 = vsel %vm313, %v315, %v311
        %v317 = vmul.f32 1.0, %v316
        %v318 = vmul.f32 %v240, %v302
        %v319 = vmul.f32 %v241, %v317
        %320 = vst.msk [vmem:[%s232] sm:$0xff] %vm245, %v318
        %321 = vst.msk [vmem:[%s232 + $0x8] sm:$0xff] %vm245, %v319
        %s322 = smul.u32 %s24, 16
        %v323 = vlaneseq
        %v324 = vshrl.u32 %v323, 7
        %v325 = vadd.s32 %v324, 8
        %v326 = vstv %s322
        %v327 = vadd.s32 %v326, %v324
        %v328 = vadd.s32 %v326, %v325
        %vm329 = vcmp.lt.s32.totalorder %v327, 16
        %vm330 = vcmp.lt.s32.totalorder %v328, 16
        %v331 = vsel %vm329, 1, 0
        %v332 = vsel %vm330, 1, 0
        %vm333 = vcmp.eq.s32.totalorder %v331, 1
        %vm334 = vcmp.eq.s32.totalorder %v332, 1
        %v335 = vsel %vm333, %v318, 0.0
        %v336 = vsel %vm334, %v319, 0.0
        %v337 = vld [vmem:[%s202] sm:$0x1]
        %v338 = vsel %vm245, %v335, 0.0
        %v339 = vsel %vm245, %v336, 0.0
        %v340 = vadd.f32 %v338, %v339
        %v341 = vrot.slane %v340, 4
        %v342 = vadd.f32 %v340, %v341
        %v343 = vrot.slane %v342, 2
        %v344 = vadd.f32 %v342, %v343
        %v345 = vrot.slane %v344, 1
        %v346 = vadd.f32 %v344, %v345
        %v347 = vadd.f32 %v337, %v346
        %vm348 = vcmask 24576
        %349 = vst.msk [vmem:[%s202] sm:$0x1] %vm348, %v347
        // Predicated region
        $region37: #{tpu_custom_call.1} parent=27 // pred_check
          %p350 = pneg %p234
        $region38: #{tpu_custom_call.1} parent=27 // pred_check_branch
          %352 = sbr.rel (%p350) target = $region40
        $region39: #{tpu_custom_call.1} parent=27 // pred_region
          %v353 = vld [vmem:[%s202] sm:$0x1]
          %v354 = vmul.f32 %v353, 0.0625
          %355 = vst.msk [vmem:[%s202] sm:$0x1] %vm348, %v354
        $region40: #{tpu_custom_call.1} parent=27 // pred_fallthru
          _
        %s356 = sand.u32 %s88, 1
        %s357 = scalar_lea.sflag [#allocation3], %s356
        %s358 = sand.u32 %s88, 1
        %s359 = scalar_lea.vmem [#allocation5], %s358
        %s360 = smul.u32 2, %s24
        %p361 = scmp.lt.s32.totalorder %s23, 1
        %s362 = scalar_select %p361, %s23, 1
        %p363 = scmp.lt.s32.totalorder %s360, 1
        %s364 = scalar_select %p363, %s360, 1
        %s365 = smul.addr %s362, 2
        %s366 = sadd.s32 %s364, %s365
        %s367 = smul.addr %s366, 8
        %s368 = scalar_lea.vmem %s3, %s367
        // Predicated region
        $region41: #{tpu_custom_call.1} parent=27 // pred_check
          %p369 = pneg %p98
        $region42: #{tpu_custom_call.1} parent=27 // pred_check_branch
          %371 = sbr.rel (%p369) target = $region44
        $region43: #{tpu_custom_call.1} parent=27 // pred_region
          %373 = vsyncadd %s357, 0
          %s374 = scalar_lea.hbm %s2, %s23
          %s376 = sshll.u32 %s359, 4
          %s377 = int_to_ptr.vmem [resolvable:$true] %s376
          %s378 = sshll.u32 %s374, 4
          %s379 = int_to_ptr.hbm [resolvable:$true] %s378
          %381 = dma.vmem_to_hbm [thread:$0]  %s377, 16, %s379, %s357
        $region44: #{tpu_custom_call.1} parent=27 // pred_fallthru
          _
        // Predicated region
        $region45: #{tpu_custom_call.1} parent=27 // pred_check
          %p382 = pneg %p126
        $region46: #{tpu_custom_call.1} parent=27 // pred_check_branch
          %384 = sbr.rel (%p382) target = $region48
        $region47: #{tpu_custom_call.1} parent=27 // pred_region
          %s385 = smul.u32 2, %s24
        $region48: #{tpu_custom_call.1} parent=27 // pred_fallthru
          _
      $region28: #{tpu_custom_call.1} parent=5 // pred_fallthru
        _
      %p386 = scmp.le.s32.totalorder 2, %s14
      // Predicated region
      $region49: #{tpu_custom_call.1} parent=5 // pred_check
        %p387 = pneg %p386
      $region50: #{tpu_custom_call.1} parent=5 // pred_check_branch
        %389 = sbr.rel (%p387) target = $region52
      $region51: #{tpu_custom_call.1} parent=5 // pred_region
        %s390 = ssub.s32 %s14, 2
        // Predicated region
        $region53: #{tpu_custom_call.1} parent=51 // pred_check
          %p391 = pneg %p104
        $region54: #{tpu_custom_call.1} parent=51 // pred_check_branch
          %393 = sbr.rel (%p391) target = $region56
        $region55: #{tpu_custom_call.1} parent=51 // pred_region
          %s394 = sand.u32 %s89, 1
          %s395 = scalar_lea.sflag [#allocation3], %s394
          %s396 = sand.u32 %s89, 1
          %s397 = scalar_lea.vmem [#allocation5], %s396
          %399 = dma.done %s395, 16
        $region56: #{tpu_custom_call.1} parent=51 // pred_fallthru
          _
        // Predicated region
        $region57: #{tpu_custom_call.1} parent=51 // pred_check
          %p400 = pneg %p132
        $region58: #{tpu_custom_call.1} parent=51 // pred_check_branch
          %402 = sbr.rel (%p400) target = $region60
        $region59: #{tpu_custom_call.1} parent=51 // pred_region
          %s403 = smul.u32 2, %s26
          %p404 = scmp.lt.s32.totalorder %s25, 1
          %s405 = scalar_select %p404, %s25, 1
          %p406 = scmp.lt.s32.totalorder %s403, 1
          %s407 = scalar_select %p406, %s403, 1
          %s408 = smul.addr %s405, 2
          %s409 = sadd.s32 %s407, %s408
          %s410 = smul.addr %s409, 8
          %s411 = scalar_lea.vmem %s3, %s410
        $region60: #{tpu_custom_call.1} parent=51 // pred_fallthru
          _
      $region52: #{tpu_custom_call.1} parent=5 // pred_fallthru
        _
    $region6: #{tpu_custom_call.1} parent=1 // loop_footer
      %s18 = sadd.s32 1, %s14
    $region7: #{tpu_custom_call.1} parent=1 // loop_footer_branch
      %13 = sbr.rel target = $region3
    $region8: #{tpu_custom_call.1} parent=1 // loop_exit
      _
    %412 = vsyncpa [#allocation3], 1
    %s413 = scalar_lea.sflag [#allocation3], 1
    %414 = vsyncpa %s413, 1
    %415 = vsyncpa [#allocation4], 1
    %s416 = scalar_lea.sflag [#allocation4], 1
    %417 = vsyncpa %s416, 1

</llo_original>
